<compile_context>
chip_gen: v5e
topology: v5e:2x2
jax: 0.10.0
libtpu: 0.0.40
codegen_flags: <defaults>
</compile_context>

<pallas_src>
import jax
import jax.numpy as jnp
from jax.experimental import pallas as pl
from jax.experimental.pallas import tpu as pltpu

_MIB = 1024 * 1024


# ---------------------------------------------------------------------------
# helpers
# ---------------------------------------------------------------------------

def _spatial_tile(n, cap=2048):
    """Largest spatial chunk (multiple of 128) that divides n and is <= cap.

    Falls back to the full extent when n is small or has no suitable divisor
    (full-extent blocks are always legal)."""
    if n <= cap:
        return n
    t = (cap // 128) * 128
    while t >= 128:
        if n % t == 0:
            return t
        t -= 128
    return n


def _physical_vmem_bytes():
    try:
        info = pltpu.get_tpu_info()
        return int(getattr(info, "vmem_capacity_bytes", 64 * _MIB))
    except Exception:
        return 64 * _MIB          # conservative: v7x per-core VMEM


def _vmem_limit(block_bytes, scratch_bytes=0):
    """Scoped-VMEM request: double-buffered blocks + scratch + headroom."""
    need = 2 * block_bytes + scratch_bytes + 4 * _MIB
    cap = max(32 * _MIB, _physical_vmem_bytes() - 16 * _MIB)
    return int(min(max(need, 32 * _MIB), cap))


# ---------------------------------------------------------------------------
# kernel 1: summed channel-attention matrix
# ---------------------------------------------------------------------------

def _cam_attn_kernel(q_ref, k_ref, attn_ref, energy_acc):
    """One (t, b, s, nk) step of  attn[t,b] = sum_s softmax(Q[t,b] @ K[s,b]^T).

    q_ref      : (1, 1, C, NT)  query chunk for (t, b)          [compute dtype]
    k_ref      : (1, 1, NT, C)  pre-transposed key chunk (s, b) [compute dtype]
    attn_ref   : (1, 1, C, C)   f32 output, resident across (s, nk)
    energy_acc : (C, C)         f32 VMEM scratch: energy accumulated over nk
    """
    s = pl.program_id(2)
    nk = pl.program_id(3)

    @pl.when(jnp.logical_and(s == 0, nk == 0))
    def _init_output():
        attn_ref[...] = jnp.zeros_like(attn_ref)

    # (C, NT) @ (NT, C) -> (C, C); contraction on the RHS leading dim keeps the
    # MXU feed natural (no XLU transpose of the key tile every step).
    partial = jnp.dot(q_ref[0, 0], k_ref[0, 0],
                      preferred_element_type=jnp.float32)

    @pl.when(nk == 0)
    def _first_chunk():
        energy_acc[...] = partial

    @pl.when(nk > 0)
    def _next_chunk():
        energy_acc[...] += partial

    @pl.when(nk == pl.num_programs(3) - 1)
    def _softmax_and_accumulate():
        e = energy_acc[...]
        m = jnp.max(e, axis=-1, keepdims=True)
        p = jnp.exp(e - m)
        inv = pl.reciprocal(jnp.sum(p, axis=-1, keepdims=True), approx=False)
        attn_ref[0, 0] += p * inv


def _cam_attention(q, kt, *, n_tile):
    """q: (T, B, C, N), kt: (S, B, N, C)  ->  attn: (T, B, C, C) f32."""
    T, B, C, N = q.shape
    S = kt.shape[0]
    nk = N // n_tile
    isz = jnp.dtype(q.dtype).itemsize
    block_bytes = 2 * C * n_tile * isz + C * C * 4     # q chunk + k chunk + out
    vmem = _vmem_limit(block_bytes, scratch_bytes=C * C * 4)
    return pl.pallas_call(
        _cam_attn_kernel,
        out_shape=jax.ShapeDtypeStruct((T, B, C, C), jnp.float32),
        grid=(T, B, S, nk),
        in_specs=[
            pl.BlockSpec((1, 1, C, n_tile), lambda t, b, s, n: (t, b, 0, n)),
            pl.BlockSpec((1, 1, n_tile, C), lambda t, b, s, n: (s, b, n, 0)),
        ],
        out_specs=pl.BlockSpec((1, 1, C, C), lambda t, b, s, n: (t, b, 0, 0)),
        scratch_shapes=[pltpu.VMEM((C, C), jnp.float32)],
        compiler_params=pltpu.CompilerParams(
            dimension_semantics=("parallel", "parallel", "arbitrary", "arbitrary"),
            vmem_limit_bytes=vmem),
    )(q, kt)


# ---------------------------------------------------------------------------
# kernel 2: fused 1x1 "value" conv + attention bmm, per spatial chunk
# ---------------------------------------------------------------------------

def _cam_out_kernel(attn_ref, q_ref, w_ref, b_ref, out_ref):
    """out[t,b,:,chunk] = attn[t,b] @ (W[t] @ Q[t,b,:,chunk] + bias[t]).

    attn_ref : (1, 1, C, C)  f32 summed attention
    q_ref    : (1, 1, C, NJ) query chunk               [compute dtype]
    w_ref    : (1, C, C)     1x1-conv weight           [compute dtype]
    b_ref    : (1, C, 1)     1x1-conv bias             [f32]
    out_ref  : (1, 1, C, NJ) output chunk
    """
    q = q_ref[0, 0]
    value = jnp.dot(w_ref[0], q, preferred_element_type=jnp.float32) + b_ref[0]
    out = jnp.dot(attn_ref[0, 0].astype(q.dtype), value.astype(q.dtype),
                  preferred_element_type=jnp.float32)
    out_ref[0, 0] = out.astype(out_ref.dtype)


def _cam_apply(attn, q, w, bias, *, n_tile, out_dtype):
    T, B, C, N = q.shape
    nj = N // n_tile
    isz = jnp.dtype(q.dtype).itemsize
    block_bytes = (C * C * 4 + C * n_tile * isz + C * C * isz + C * 4
                   + C * n_tile * 4)
    vmem = _vmem_limit(block_bytes)
    return pl.pallas_call(
        _cam_out_kernel,
        out_shape=jax.ShapeDtypeStruct((T, B, C, N), out_dtype),
        grid=(T, B, nj),
        in_specs=[
            pl.BlockSpec((1, 1, C, C), lambda t, b, n: (t, b, 0, 0)),
            pl.BlockSpec((1, 1, C, n_tile), lambda t, b, n: (t, b, 0, n)),
            pl.BlockSpec((1, C, C), lambda t, b, n: (t, 0, 0)),
            pl.BlockSpec((1, C, 1), lambda t, b, n: (t, 0, 0)),
        ],
        out_specs=pl.BlockSpec((1, 1, C, n_tile), lambda t, b, n: (t, b, 0, n)),
        compiler_params=pltpu.CompilerParams(
            dimension_semantics=("parallel", "parallel", "parallel"),
            vmem_limit_bytes=vmem),
    )(attn, q, w, bias)


# ---------------------------------------------------------------------------
# module forward
# ---------------------------------------------------------------------------

def cam_module_forward(feat_sources, feat_targets, value_weights, value_biases,
                       mode="alpha_cam", compute_dtype=None, spatial_tile_cap=2048):
    """Mirrors CAM_Module.forward.

    feat_sources : list of S arrays (B, C, H, W)
    feat_targets : list of T arrays (B, C, H, W)
    value_weights: list of T Conv2d(k=1) weights (C, C, 1, 1)
    value_biases : list of T Conv2d(k=1) biases (C,)
    compute_dtype: optional lower-precision dtype (e.g. jnp.bfloat16) for the
                   matmul inputs; accumulation stays f32.
    """
    T = len(feat_targets)
    B, C, H, W = feat_targets[0].shape
    N = H * W

    q = jnp.stack([f.reshape(B, C, N) for f in feat_targets], axis=0)     # (T,B,C,N)
    k = jnp.stack([f.reshape(B, C, N) for f in feat_sources], axis=0)     # (S,B,C,N)
    kt = jnp.transpose(k, (0, 1, 3, 2))                                   # (S,B,N,C)
    w = jnp.stack([wt[:, :, 0, 0] for wt in value_weights], axis=0)       # (T,C,C)
    bias = jnp.stack([bt.reshape(C, 1) for bt in value_biases], axis=0)   # (T,C,1)
    bias = bias.astype(jnp.float32)

    cd = q.dtype if compute_dtype is None else compute_dtype
    qc, ktc, wc = q.astype(cd), kt.astype(cd), w.astype(cd)

    # energy.mean() per (target, source), exact and cheap in XLA:
    #   mean_{b,c,d}(Q_c . K_d) == sum_{b,n}(sum_c Q)(sum_c K) / (B*C*C)
    means = jnp.einsum('tbn,sbn->ts',
                       q.astype(jnp.float32).sum(axis=2),
                       k.astype(jnp.float32).sum(axis=2)) / (B * C * C)    # (T,S)

    n_tile = _spatial_tile(N, cap=spatial_tile_cap)

    attn = _cam_attention(qc, ktc, n_tile=n_tile)                          # (T,B,C,C)

    need_feats = mode in ['all', 'pam', 'cam', 'alpha_cam', 'alpha_all']
    if need_feats:
        out = _cam_apply(attn, qc, wc, bias, n_tile=n_tile,
                         out_dtype=feat_targets[0].dtype)                  # (T,B,C,N)

    ret_feats, ret_alphas = [], []
    for t in range(T):
        if mode.find('alpha') >= 0:
            ret_alphas.append(jax.nn.softmax(means[t], axis=0))
        else:
            ret_alphas.append(jnp.mean(means[t]))
        if need_feats:
            ret_feats.append(out[t].reshape(B, C, H, W))
    if mode.find('alpha') >= 0:
        ret_alphas = jnp.stack(ret_alphas, axis=0)
    else:
        ret_alphas = jax.nn.softmax(jnp.stack(ret_alphas), axis=0)
    return ret_feats, ret_alphas


# ---------------------------------------------------------------------------
# pure-JAX reference (correctness check)
# ---------------------------------------------------------------------------

def _ref_forward(feat_sources, feat_targets, value_weights, value_biases, mode):
    ret_feats, ret_alphas = [], []
    for i, query in enumerate(feat_targets):
        B, C, H, W = query.shape
        Q = query.reshape(B, C, -1)
        means, attns = [], []
        for key_ in feat_sources:
            K = key_.reshape(B, C, -1)
            energy = jnp.einsum('bcn,bdn->bcd', Q, K)
            means.append(jnp.mean(energy))
            attns.append(jax.nn.softmax(energy, axis=-1))
        means = jnp.stack(means)
        if 'alpha' in mode:
            ret_alphas.append(jax.nn.softmax(means, axis=0))
        else:
            ret_alphas.append(jnp.mean(means))
        if mode in ['all', 'pam', 'cam', 'alpha_cam', 'alpha_all']:
            attention = sum(attns)
            Wm = value_weights[i][:, :, 0, 0]
            bm = value_biases[i]
            value = jnp.einsum('oc,bcn->bon', Wm, Q) + bm[None, :, None]
            out = jnp.einsum('bcd,bdn->bcn', attention, value).reshape(B, C, H, W)
            ret_feats.append(out)
    if 'alpha' in mode:
        ret_alphas = jnp.stack(ret_alphas)
    else:
        ret_alphas = jax.nn.softmax(jnp.stack(ret_alphas))
    return ret_feats, ret_alphas


if __name__ == "__main__":
    B, C, H, W = 2, 8, 16, 16        # sizes = (B, C, H, W); C = sizes[1]
    num_targets, num_sources = 2, 2  # num = number of 'value' 1x1 convs
    mode = "alpha_cam"

    k0 = jax.random.PRNGKey(0)
    ks = jax.random.split(k0, 2 * num_targets + num_sources + num_targets)
    idx = 0
    feat_targets = [jax.random.normal(ks[idx + t], (B, C, H, W), jnp.float32)
                    for t in range(num_targets)]
    idx += num_targets
    feat_sources = [jax.random.normal(ks[idx + s], (B, C, H, W), jnp.float32)
                    for s in range(num_sources)]
    idx += num_sources
    value_weights = [0.1 * jax.random.normal(ks[idx + t], (C, C, 1, 1), jnp.float32)
                     for t in range(num_targets)]
    idx += num_targets
    value_biases = [0.1 * jax.random.normal(ks[idx + t], (C,), jnp.float32)
                    for t in range(num_targets)]

    # --- f32 path: strict check against the pure-JAX reference -------------
    feats, alphas = cam_module_forward(feat_sources, feat_targets,
                                       value_weights, value_biases, mode=mode)
    for f in feats:
        jax.block_until_ready(f)
    jax.block_until_ready(alphas)

    ref_feats, ref_alphas = _ref_forward(feat_sources, feat_targets,
                                         value_weights, value_biases, mode)
    for f, rf in zip(feats, ref_feats):
        assert jnp.allclose(f, rf, rtol=1e-3, atol=1e-3), "feature mismatch (f32)"
    assert jnp.allclose(alphas, ref_alphas, rtol=1e-3, atol=1e-4), "alpha mismatch (f32)"

    # --- bf16 compute path (perf mode): loose sanity check ------------------
    feats16, alphas16 = cam_module_forward(feat_sources, feat_targets,
                                           value_weights, value_biases,
                                           mode=mode, compute_dtype=jnp.bfloat16)
    for f in feats16:
        jax.block_until_ready(f)
    jax.block_until_ready(alphas16)
    for f, rf in zip(feats16, ref_feats):
        assert jnp.all(jnp.isfinite(f)), "non-finite bf16 output"
        assert jnp.allclose(f, rf, rtol=2e-1, atol=2e-1), "feature mismatch (bf16)"
    assert jnp.allclose(alphas16, ref_alphas, rtol=1e-1, atol=1e-1), "alpha mismatch (bf16)"

    print("KERNEL_OK")
</pallas_src>

<mosaic_0001>
module attributes {stable_mosaic.version = 11 : i64} {
  func.func @_cam_attn_kernel(%arg0: i32, %arg1: i32, %arg2: i32, %arg3: i32, %arg4: memref<1x1x8x256xf32, #tpu.memory_space<vmem>>, %arg5: memref<1x1x256x8xf32, #tpu.memory_space<vmem>>, %arg6: memref<1x1x8x8xf32, #tpu.memory_space<vmem>>, %arg7: memref<8x8xf32, #tpu.memory_space<vmem>>) attributes {dimension_semantics = [#tpu.dimension_semantics<parallel>, #tpu.dimension_semantics<parallel>, #tpu.dimension_semantics<arbitrary>, #tpu.dimension_semantics<arbitrary>], iteration_bounds = array<i64: 2, 2, 2, 1>, scalar_prefetch = 0 : i64, scratch_operands = 1 : i64, tpu.core_type = #tpu.core_type<tc>, window_params = [{transform_indices = @transform_0, window_bounds = array<i64: 1, 1, 8, 256>}, {transform_indices = @transform_1, window_bounds = array<i64: 1, 1, 256, 8>}, {transform_indices = @transform_2, window_bounds = array<i64: 1, 1, 8, 8>}]} {
    %c0_i32 = arith.constant 0 : i32
    %0 = arith.cmpi eq, %arg2, %c0_i32 : i32
    %c0_i32_0 = arith.constant 0 : i32
    %1 = arith.cmpi eq, %arg3, %c0_i32_0 : i32
    %2 = arith.andi %0, %1 : i1
    %3 = arith.extui %2 : i1 to i32
    %c0_i32_1 = arith.constant 0 : i32
    %4 = arith.cmpi ne, %3, %c0_i32_1 : i32
    scf.if %4 {
      %cst_15 = arith.constant 0.000000e+00 : f32
      %19 = vector.broadcast %cst_15 : f32 to vector<1x1x8x8xf32>
      %c0_16 = arith.constant 0 : index
      %c0_17 = arith.constant 0 : index
      %c0_18 = arith.constant 0 : index
      %c0_19 = arith.constant 0 : index
      %20 = vector.load %arg6[%c0_16, %c0_17, %c0_18, %c0_19] : memref<1x1x8x8xf32, #tpu.memory_space<vmem>>, vector<1x1x8x8xf32>
      tpu.vector_store %arg6[%c0_16, %c0_17, %c0_18, %c0_19], %19 {strides = array<i32>} : memref<1x1x8x8xf32, #tpu.memory_space<vmem>>, vector<1x1x8x8xf32>,
    } else {
    }
    %c0 = arith.constant 0 : index
    %c0_2 = arith.constant 0 : index
    %c0_3 = arith.constant 0 : index
    %c0_4 = arith.constant 0 : index
    %5 = vector.load %arg4[%c0, %c0_2, %c0_3, %c0_4] : memref<1x1x8x256xf32, #tpu.memory_space<vmem>>, vector<1x1x8x256xf32>
    %6 = vector.shape_cast %5 : vector<1x1x8x256xf32> to vector<8x256xf32>
    %c0_5 = arith.constant 0 : index
    %c0_6 = arith.constant 0 : index
    %c0_7 = arith.constant 0 : index
    %c0_8 = arith.constant 0 : index
    %7 = vector.load %arg5[%c0_5, %c0_6, %c0_7, %c0_8] : memref<1x1x256x8xf32, #tpu.memory_space<vmem>>, vector<1x1x256x8xf32>
    %8 = vector.shape_cast %7 : vector<1x1x256x8xf32> to vector<256x8xf32>
    %cst = arith.constant dense<0.000000e+00> : vector<8x8xf32>
    %9 = tpu.matmul %6, %8, %cst {dimension_numbers = #tpu.dot_dimension_numbers<[1], [0], [0], [1], [0, 0, 1, 1], [], []>} : vector<8x256xf32>, vector<256x8xf32>, vector<8x8xf32> -> vector<8x8xf32>
    %c0_i32_9 = arith.constant 0 : i32
    %10 = arith.cmpi eq, %arg3, %c0_i32_9 : i32
    %11 = arith.extui %10 : i1 to i32
    %c0_i32_10 = arith.constant 0 : i32
    %12 = arith.cmpi ne, %11, %c0_i32_10 : i32
    scf.if %12 {
      %c0_15 = arith.constant 0 : index
      %c0_16 = arith.constant 0 : index
      %19 = vector.load %arg7[%c0_15, %c0_16] : memref<8x8xf32, #tpu.memory_space<vmem>>, vector<8x8xf32>
      tpu.vector_store %arg7[%c0_15, %c0_16], %9 {strides = array<i32>} : memref<8x8xf32, #tpu.memory_space<vmem>>, vector<8x8xf32>,
    } else {
    }
    %c0_i32_11 = arith.constant 0 : i32
    %13 = arith.cmpi sgt, %arg3, %c0_i32_11 : i32
    %14 = arith.extui %13 : i1 to i32
    %c0_i32_12 = arith.constant 0 : i32
    %15 = arith.cmpi ne, %14, %c0_i32_12 : i32
    scf.if %15 {
      %c0_15 = arith.constant 0 : index
      %c0_16 = arith.constant 0 : index
      %19 = vector.load %arg7[%c0_15, %c0_16] : memref<8x8xf32, #tpu.memory_space<vmem>>, vector<8x8xf32>
      %20 = arith.addf %19, %9 : vector<8x8xf32>
      %c0_17 = arith.constant 0 : index
      %c0_18 = arith.constant 0 : index
      %21 = vector.load %arg7[%c0_17, %c0_18] : memref<8x8xf32, #tpu.memory_space<vmem>>, vector<8x8xf32>
      tpu.vector_store %arg7[%c0_17, %c0_18], %20 {strides = array<i32>} : memref<8x8xf32, #tpu.memory_space<vmem>>, vector<8x8xf32>,
    } else {
    }
    %c0_i32_13 = arith.constant 0 : i32
    %16 = arith.cmpi eq, %arg3, %c0_i32_13 : i32
    %17 = arith.extui %16 : i1 to i32
    %c0_i32_14 = arith.constant 0 : i32
    %18 = arith.cmpi ne, %17, %c0_i32_14 : i32
    scf.if %18 {
      %c0_15 = arith.constant 0 : index
      %c0_16 = arith.constant 0 : index
      %19 = vector.load %arg7[%c0_15, %c0_16] : memref<8x8xf32, #tpu.memory_space<vmem>>, vector<8x8xf32>
      %cst_17 = arith.constant dense<0xFF800000> : vector<8xf32>
      %20 = vector.multi_reduction <maximumf>, %19, %cst_17 [1] : vector<8x8xf32> to vector<8xf32>
      %21 = vector.shape_cast %20 : vector<8xf32> to vector<8x1xf32>
      %22 = vector.broadcast %21 : vector<8x1xf32> to vector<8x8xf32>
      %23 = arith.subf %19, %22 : vector<8x8xf32>
      %24 = math.exp %23 : vector<8x8xf32>
      %cst_18 = arith.constant dense<0.000000e+00> : vector<8xf32>
      %25 = vector.multi_reduction <add>, %24, %cst_18 [1] : vector<8x8xf32> to vector<8xf32>
      %26 = vector.shape_cast %25 : vector<8xf32> to vector<8x1xf32>
      %27 = tpu.reciprocal %26 : vector<8x1xf32> -> vector<8x1xf32>
      %c0_19 = arith.constant 0 : index
      %c0_20 = arith.constant 0 : index
      %c0_21 = arith.constant 0 : index
      %c0_22 = arith.constant 0 : index
      %28 = vector.load %arg6[%c0_19, %c0_20, %c0_21, %c0_22] : memref<1x1x8x8xf32, #tpu.memory_space<vmem>>, vector<1x1x8x8xf32>
      %29 = vector.shape_cast %28 : vector<1x1x8x8xf32> to vector<8x8xf32>
      %30 = vector.broadcast %27 : vector<8x1xf32> to vector<8x8xf32>
      %31 = arith.mulf %24, %30 : vector<8x8xf32>
      %32 = arith.addf %29, %31 : vector<8x8xf32>
      %c0_23 = arith.constant 0 : index
      %c0_24 = arith.constant 0 : index
      %c0_25 = arith.constant 0 : index
      %c0_26 = arith.constant 0 : index
      %33 = vector.load %arg6[%c0_23, %c0_24, %c0_25, %c0_26] : memref<1x1x8x8xf32, #tpu.memory_space<vmem>>, vector<1x1x8x8xf32>
      %34 = vector.shape_cast %33 : vector<1x1x8x8xf32> to vector<8x8xf32>
      %35 = vector.shape_cast %32 : vector<8x8xf32> to vector<1x1x8x8xf32>
      tpu.vector_store %arg6[%c0_23, %c0_24, %c0_25, %c0_26], %35 {strides = array<i32>} : memref<1x1x8x8xf32, #tpu.memory_space<vmem>>, vector<1x1x8x8xf32>,
    } else {
    }
    return
  }
  func.func @transform_0(%arg0: i32, %arg1: i32, %arg2: i32, %arg3: i32) -> (i32, i32, i32, i32) {
    %c0_i32 = arith.constant 0 : i32
    %c0_i32_0 = arith.constant 0 : i32
    return %arg0, %arg1, %c0_i32, %arg3 : i32, i32, i32, i32
  }
  func.func @transform_1(%arg0: i32, %arg1: i32, %arg2: i32, %arg3: i32) -> (i32, i32, i32, i32) {
    %c0_i32 = arith.constant 0 : i32
    %c0_i32_0 = arith.constant 0 : i32
    return %arg2, %arg1, %arg3, %c0_i32 : i32, i32, i32, i32
  }
  func.func @transform_2(%arg0: i32, %arg1: i32, %arg2: i32, %arg3: i32) -> (i32, i32, i32, i32) {
    %c0_i32 = arith.constant 0 : i32
    %c0_i32_0 = arith.constant 0 : i32
    %c0_i32_1 = arith.constant 0 : i32
    return %arg0, %arg1, %c0_i32, %c0_i32_0 : i32, i32, i32, i32
  }
}

</mosaic_0001>

<llo_original>
// kernel: tpu_custom_call.1
$region0: #{tpu_custom_call.1}
  #allocation0 [shape = 'u32[]', space=smem, size = 0x4, offset = 0x4, fixed_abs, tag = 'smem constant byte address 0x4 - core index']
  #allocation1 [shape = 'u32[72,128]{1,0:T(1,128)}', space=vmem, size = 0x9000, scoped, tag = 'internal scratch']
  #allocation2 [shape = 'f32[8,8]{1,0:T(8,128)}', space=vmem, size = 0x1000, scoped, tag = 'scratch operand']
  %s0 = inlined_call_operand.vmem [shape: f32[2,2,8,256], index: 0, kind: input, shape index: {}]
  %s1 = inlined_call_operand.vmem [shape: f32[2,2,256,8], index: 1, kind: input, shape index: {}]
  %s2 = inlined_call_operand.hbm [shape: f32[2,2,8,8], index: 2, kind: output, shape index: {}]
  %s3 = sld [smem:[#allocation0]]
  $region57: #{tpu_custom_call.1} parent=0
    _
  %s5 = ssub.s32 1, %s3
  %s6 = scalar_select 0, %s5, %s3
  $region1: #{tpu_custom_call.1} parent=0
    #allocation3 [shape = 'u8[8192]{0}', space=vmem, size = 0x2000, scoped, tag = 'output window, operand 0']
    #allocation4 [shape = 's32[2]{0}', space=sflag, size = 0x8, scoped, tag = 'scoped memory for tpu_custom_call.1']
    %7 = vsyncpa [#allocation4], 0
    %s8 = scalar_lea.sflag [#allocation4], 1
    %9 = vsyncpa %s8, 0
    loop: start=0, step=1, limit=10
    $region2: #{tpu_custom_call.1} parent=1 // loop_pre_header
      _
    $region3: #{tpu_custom_call.1} parent=1 // loop_header
      %s11 = sphi 0, %s15
      %p12 = scmp.ge.s32.totalorder %s11, 10
      %s18 = sphi 0, %s44
      %s19 = sphi 0, %s40
      %s20 = sphi 0, %s36
      %s21 = sphi 0, %s32
      %s22 = sphi 0, %s18
      %s23 = sphi 0, %s19
      %s24 = sphi 0, %s20
      %s25 = sphi 0, %s21
      %s26 = sphi 0, %s22
      %s27 = sphi 0, %s23
      %s28 = sphi 0, %s24
      %s29 = sphi 0, %s25
      %s51 = sphi 0, %s53
      %s54 = sphi 0, %s51
      %s55 = sphi 0, %s54
      %s71 = sphi 0, %s55
      %s81 = sphi 0, %s83
      %s84 = sphi 0, %s81
      %s85 = sphi 0, %s84
      %s101 = sphi 0, %s85
      %s109 = sphi 0, %s111
      %s112 = sphi 0, %s109
      %s113 = sphi 0, %s112
      %s129 = sphi 0, %s113
    $region4: #{tpu_custom_call.1} parent=1 // loop_header_branch
      %14 = sbr.rel (%p12) target = $region8
    $region5: #{tpu_custom_call.1} parent=1 // loop_body
      %s16 = ssub.s32 %s11, 1
      %s17 = ssub.s32 %s11, 2
      %s30 = sadd.s32 1, %s21
      %p31 = scmp.ge.s32.totalorder %s30, 1
      %s32 = scalar_select %p31, 0, %s30
      %s33 = sadd.s32 1, %s20
      %s34 = scalar_select %p31, %s33, %s20
      %p35 = scmp.ge.s32.totalorder %s34, 2
      %s36 = scalar_select %p35, 0, %s34
      %s37 = sadd.s32 1, %s19
      %s38 = scalar_select %p35, %s37, %s19
      %p39 = scmp.ge.s32.totalorder %s38, 2
      %s40 = scalar_select %p39, 0, %s38
      %s41 = sadd.s32 1, %s18
      %s42 = scalar_select %p39, %s41, %s18
      %p43 = scmp.ge.s32.totalorder %s42, 2
      %s44 = scalar_select %p43, 0, %s42
      %s45 = ssub.s32 %s18, %s44
      %s46 = ssub.s32 %s19, %s40
      %s47 = sor.u32 %s45, %s46
      %s48 = ssub.s32 %s21, %s32
      %s49 = sor.u32 %s47, %s48
      %p50 = scmp.eq.s32.totalorder %s49, 0
      %s52 = sadd.s32 %s51, 1
      %s53 = scalar_select %p50, %s51, %s52
      %p56 = pneg %p50
      %p57 = scmp.eq.s32.totalorder %s11, 7
      %p58 = por %p56, %p57
      %p59 = scmp.ne.s32.totalorder %s51, %s54
      %p60 = scmp.eq.s32.totalorder %s11, 0
      %p61 = por %p59, %p60
      %p62 = scmp.ne.s32.totalorder %s51, %s54
      %p63 = scmp.eq.s32.totalorder %s16, 7
      %p64 = por %p62, %p63
      %p65 = scmp.ne.s32.totalorder %s54, %s55
      %p66 = scmp.eq.s32.totalorder %s16, 0
      %p67 = por %p65, %p66
      %p68 = scmp.ne.s32.totalorder %s54, %s55
      %p69 = scmp.eq.s32.totalorder %s17, 7
      %p70 = por %p68, %p69
      %p72 = scmp.ne.s32.totalorder %s55, %s71
      %p73 = scmp.eq.s32.totalorder %s17, 0
      %p74 = por %p72, %p73
      %s75 = ssub.s32 %s20, %s36
      %s76 = ssub.s32 %s19, %s40
      %s77 = sor.u32 %s75, %s76
      %s78 = ssub.s32 %s21, %s32
      %s79 = sor.u32 %s77, %s78
      %p80 = scmp.eq.s32.totalorder %s79, 0
      %s82 = sadd.s32 %s81, 1
      %s83 = scalar_select %p80, %s81, %s82
      %p86 = pneg %p80
      %p87 = scmp.eq.s32.totalorder %s11, 7
      %p88 = por %p86, %p87
      %p89 = scmp.ne.s32.totalorder %s81, %s84
      %p90 = scmp.eq.s32.totalorder %s11, 0
      %p91 = por %p89, %p90
      %p92 = scmp.ne.s32.totalorder %s81, %s84
      %p93 = scmp.eq.s32.totalorder %s16, 7
      %p94 = por %p92, %p93
      %p95 = scmp.ne.s32.totalorder %s84, %s85
      %p96 = scmp.eq.s32.totalorder %s16, 0
      %p97 = por %p95, %p96
      %p98 = scmp.ne.s32.totalorder %s84, %s85
      %p99 = scmp.eq.s32.totalorder %s17, 7
      %p100 = por %p98, %p99
      %p102 = scmp.ne.s32.totalorder %s85, %s101
      %p103 = scmp.eq.s32.totalorder %s17, 0
      %p104 = por %p102, %p103
      %s105 = ssub.s32 %s18, %s44
      %s106 = ssub.s32 %s19, %s40
      %s107 = sor.u32 %s105, %s106
      %p108 = scmp.eq.s32.totalorder %s107, 0
      %s110 = sadd.s32 %s109, 1
      %s111 = scalar_select %p108, %s109, %s110
      %p114 = pneg %p108
      %p115 = scmp.eq.s32.totalorder %s11, 7
      %p116 = por %p114, %p115
      %p117 = scmp.ne.s32.totalorder %s109, %s112
      %p118 = scmp.eq.s32.totalorder %s11, 0
      %p119 = por %p117, %p118
      %p120 = scmp.ne.s32.totalorder %s109, %s112
      %p121 = scmp.eq.s32.totalorder %s16, 7
      %p122 = por %p120, %p121
      %p123 = scmp.ne.s32.totalorder %s112, %s113
      %p124 = scmp.eq.s32.totalorder %s16, 0
      %p125 = por %p123, %p124
      %p126 = scmp.ne.s32.totalorder %s112, %s113
      %p127 = scmp.eq.s32.totalorder %s17, 7
      %p128 = por %p126, %p127
      %p130 = scmp.ne.s32.totalorder %s113, %s129
      %p131 = scmp.eq.s32.totalorder %s17, 0
      %p132 = por %p130, %p131
      %p133 = scmp.le.s32.totalorder 1, %s11
      %p134 = scmp.lt.s32.totalorder %s11, 9
      %p135 = pnand %p133, %p134
      %p136 = pneg %p135
      // Predicated region
      $region9: #{tpu_custom_call.1} parent=5 // pred_check
        _
      $region10: #{tpu_custom_call.1} parent=5 // pred_check_branch
        %138 = sbr.rel (%p135) target = $region12
      $region11: #{tpu_custom_call.1} parent=5 // pred_region
        %s139 = ssub.s32 %s11, 1
      $region12: #{tpu_custom_call.1} parent=5 // pred_fallthru
        _
      %p140 = scmp.lt.s32.totalorder %s11, 8
      // Predicated region
      $region13: #{tpu_custom_call.1} parent=5 // pred_check
        %p141 = pneg %p140
      $region14: #{tpu_custom_call.1} parent=5 // pred_check_branch
        %143 = sbr.rel (%p141) target = $region16
      $region15: #{tpu_custom_call.1} parent=5 // pred_region
        // Predicated region
        $region17: #{tpu_custom_call.1} parent=15 // pred_check
          %p144 = pneg %p61
        $region18: #{tpu_custom_call.1} parent=15 // pred_check_branch
          %146 = sbr.rel (%p144) target = $region20
        $region19: #{tpu_custom_call.1} parent=15 // pred_region
          %s147 = smul.u32 2, %s21
          %p148 = scmp.lt.s32.totalorder %s18, 1
          %s149 = scalar_select %p148, %s18, 1
          %p150 = scmp.lt.s32.totalorder %s19, 1
          %s151 = scalar_select %p150, %s19, 1
          %p152 = scmp.lt.s32.totalorder %s147, 1
          %s153 = scalar_select %p152, %s147, 1
          %s154 = smul.addr %s151, 2
          %s155 = sadd.s32 %s153, %s154
          %s156 = smul.addr %s149, 4
          %s157 = sadd.s32 %s155, %s156
          %s158 = smul.addr %s157, 8
          %s159 = scalar_lea.vmem %s0, %s158
          %s160 = smul.u32 2, %s21
        $region20: #{tpu_custom_call.1} parent=15 // pred_fallthru
          _
        // Predicated region
        $region21: #{tpu_custom_call.1} parent=15 // pred_check
          %p161 = pneg %p91
        $region22: #{tpu_custom_call.1} parent=15 // pred_check_branch
          %163 = sbr.rel (%p161) target = $region24
        $region23: #{tpu_custom_call.1} parent=15 // pred_region
          %s164 = smul.u32 32, %s21
          %p165 = scmp.lt.s32.totalorder %s20, 1
          %s166 = scalar_select %p165, %s20, 1
          %p167 = scmp.lt.s32.totalorder %s19, 1
          %s168 = scalar_select %p167, %s19, 1
          %p169 = scmp.lt.s32.totalorder %s164, 31
          %s170 = scalar_select %p169, %s164, 31
          %s171 = smul.addr %s168, 32
          %s172 = sadd.s32 %s170, %s171
          %s173 = smul.addr %s166, 64
          %s174 = sadd.s32 %s172, %s173
          %s175 = smul.addr %s174, 8
          %s176 = scalar_lea.vmem %s1, %s175
          %s177 = smul.u32 32, %s21
        $region24: #{tpu_custom_call.1} parent=15 // pred_fallthru
          _
      $region16: #{tpu_custom_call.1} parent=5 // pred_fallthru
        _
      %p178 = scmp.le.s32.totalorder 1, %s11
      %p179 = scmp.lt.s32.totalorder %s11, 9
      %p180 = pnand %p178, %p179
      %p181 = pneg %p180
      // Predicated region
      $region25: #{tpu_custom_call.1} parent=5 // pred_check
        _
      $region26: #{tpu_custom_call.1} parent=5 // pred_check_branch
        %183 = sbr.rel (%p180) target = $region28
      $region27: #{tpu_custom_call.1} parent=5 // pred_region
        %s184 = ssub.s32 %s11, 1
        %s185 = smul.u32 2, %s25
        %p186 = scmp.lt.s32.totalorder %s22, 1
        %s187 = scalar_select %p186, %s22, 1
        %p188 = scmp.lt.s32.totalorder %s23, 1
        %s189 = scalar_select %p188, %s23, 1
        %p190 = scmp.lt.s32.totalorder %s185, 1
        %s191 = scalar_select %p190, %s185, 1
        %s192 = smul.addr %s189, 2
        %s193 = sadd.s32 %s191, %s192
        %s194 = smul.addr %s187, 4
        %s195 = sadd.s32 %s193, %s194
        %s196 = smul.addr %s195, 8
        %s197 = scalar_lea.vmem %s0, %s196
        %p198 = pneg %p67
        %p199 = pneg %p64
        %s200 = smul.u32 32, %s25
        %p201 = scmp.lt.s32.totalorder %s24, 1
        %s202 = scalar_select %p201, %s24, 1
        %p203 = scmp.lt.s32.totalorder %s23, 1
        %s204 = scalar_select %p203, %s23, 1
        %p205 = scmp.lt.s32.totalorder %s200, 31
        %s206 = scalar_select %p205, %s200, 31
        %s207 = smul.addr %s204, 32
        %s208 = sadd.s32 %s206, %s207
        %s209 = smul.addr %s202, 64
        %s210 = sadd.s32 %s208, %s209
        %s211 = smul.addr %s210, 8
        %s212 = scalar_lea.vmem %s1, %s211
        %p213 = pneg %p97
        %p214 = pneg %p94
        %p215 = pneg %p125
        %p216 = pneg %p122
        %s217 = sand.u32 %s112, 1
        %s218 = scalar_lea.sflag [#allocation4], %s217
        %s219 = sand.u32 %s112, 1
        %s220 = smul.addr %s219, 8
        %s221 = scalar_lea.vmem [#allocation3], %s220
        %s222 = smul.u32 2, %s25
        %p223 = scmp.lt.s32.totalorder %s22, 1
        %s224 = scalar_select %p223, %s22, 1
        %p225 = scmp.lt.s32.totalorder %s23, 1
        %s226 = scalar_select %p225, %s23, 1
        %p227 = scmp.lt.s32.totalorder %s222, 1
        %s228 = scalar_select %p227, %s222, 1
        %s229 = smul.addr %s226, 2
        %s230 = sadd.s32 %s228, %s229
        %s231 = smul.addr %s224, 4
        %s232 = sadd.s32 %s230, %s231
        %s233 = smul.addr %s232, 8
        %s234 = scalar_lea.vmem %s0, %s233
        %s235 = smul.u32 2, %s25
        %s236 = smul.u32 32, %s25
        %p237 = scmp.lt.s32.totalorder %s24, 1
        %s238 = scalar_select %p237, %s24, 1
        %p239 = scmp.lt.s32.totalorder %s23, 1
        %s240 = scalar_select %p239, %s23, 1
        %p241 = scmp.lt.s32.totalorder %s236, 31
        %s242 = scalar_select %p241, %s236, 31
        %s243 = smul.addr %s240, 32
        %s244 = sadd.s32 %s242, %s243
        %s245 = smul.addr %s238, 64
        %s246 = sadd.s32 %s244, %s245
        %s247 = smul.addr %s246, 8
        %s248 = scalar_lea.vmem %s1, %s247
        %s249 = smul.u32 32, %s25
        %p250 = scmp.eq.s32.totalorder %s24, 0
        %p251 = scmp.eq.s32.totalorder %s25, 0
        %p252 = pnand %p250, %p251
        %p253 = pneg %p252
        // Predicated region
        $region29: #{tpu_custom_call.1} parent=27 // pred_check
          _
        $region30: #{tpu_custom_call.1} parent=27 // pred_check_branch
          %255 = sbr.rel (%p252) target = $region32
        $region31: #{tpu_custom_call.1} parent=27 // pred_region
          %vm256 = vcmask 64512
          %257 = vst.msk [vmem:[%s221] sm:$0xff] %vm256, 0.0
        $region32: #{tpu_custom_call.1} parent=27 // pred_fallthru
          _
        %v258 = vld [vmem:[%s234] sm:$0xff]
        %v259 = vld [vmem:[%s234 + $0x8] sm:$0xff]
        %v260 = vld [vmem:[%s248] sm:$0xff]
        %v261 = vld [vmem:[%s248 + $0x8] sm:$0xff]
        %v262 = vld [vmem:[%s248 + $0x10] sm:$0xff]
        %v263 = vld [vmem:[%s248 + $0x18] sm:$0xff]
        %v264 = vld [vmem:[%s248 + $0x20] sm:$0xff]
        %v265 = vld [vmem:[%s248 + $0x28] sm:$0xff]
        %v266 = vld [vmem:[%s248 + $0x30] sm:$0xff]
        %v267 = vld [vmem:[%s248 + $0x38] sm:$0xff]
        %v268 = vld [vmem:[%s248 + $0x40] sm:$0xff]
        %v269 = vld [vmem:[%s248 + $0x48] sm:$0xff]
        %v270 = vld [vmem:[%s248 + $0x50] sm:$0xff]
        %v271 = vld [vmem:[%s248 + $0x58] sm:$0xff]
        %v272 = vld [vmem:[%s248 + $0x60] sm:$0xff]
        %v273 = vld [vmem:[%s248 + $0x68] sm:$0xff]
        %v274 = vld [vmem:[%s248 + $0x70] sm:$0xff]
        %v275 = vld [vmem:[%s248 + $0x78] sm:$0xff]
        %v276 = vld [vmem:[%s248 + $0x80] sm:$0xff]
        %v277 = vld [vmem:[%s248 + $0x88] sm:$0xff]
        %v278 = vld [vmem:[%s248 + $0x90] sm:$0xff]
        %v279 = vld [vmem:[%s248 + $0x98] sm:$0xff]
        %v280 = vld [vmem:[%s248 + $0xa0] sm:$0xff]
        %v281 = vld [vmem:[%s248 + $0xa8] sm:$0xff]
        %v282 = vld [vmem:[%s248 + $0xb0] sm:$0xff]
        %v283 = vld [vmem:[%s248 + $0xb8] sm:$0xff]
        %v284 = vld [vmem:[%s248 + $0xc0] sm:$0xff]
        %v285 = vld [vmem:[%s248 + $0xc8] sm:$0xff]
        %v286 = vld [vmem:[%s248 + $0xd0] sm:$0xff]
        %v287 = vld [vmem:[%s248 + $0xd8] sm:$0xff]
        %v288 = vld [vmem:[%s248 + $0xe0] sm:$0xff]
        %v289 = vld [vmem:[%s248 + $0xe8] sm:$0xff]
        %v290 = vld [vmem:[%s248 + $0xf0] sm:$0xff]
        %v291 = vld [vmem:[%s248 + $0xf8] sm:$0xff]
        %292 = vmatpush.msra.mxu0 %v275
        %293 = vmatpush.msra.mxu0 %v274
        %294 = vmatpush.msra.mxu0 %v273
        %295 = vmatpush.msra.mxu0 %v272
        %296 = vmatpush.msra.mxu0 %v271
        %297 = vmatpush.msra.mxu0 %v270
        %298 = vmatpush.msra.mxu0 %v269
        %299 = vmatpush.msra.mxu0 %v268
        %300 = vmatpush.msra.mxu0 %v267
        %301 = vmatpush.msra.mxu0 %v266
        %302 = vmatpush.msra.mxu0 %v265
        %303 = vmatpush.msra.mxu0 %v264
        %304 = vmatpush.msra.mxu0 %v263
        %305 = vmatpush.msra.mxu0 %v262
        %306 = vmatpush.msra.mxu0 %v261
        %307 = vmatpush.msra.mxu0 %v260
        %308 = vmatmul.f32.gmra.mxu0 %v258
        %v309 = vpop.f32.mrf.mxu0
        %v310 = vadd.f32 0.0, %v309
        %311 = vdwg.mxu0
        %312 = vmatpush.msra.mxu0 %v291
        %313 = vmatpush.msra.mxu0 %v290
        %314 = vmatpush.msra.mxu0 %v289
        %315 = vmatpush.msra.mxu0 %v288
        %316 = vmatpush.msra.mxu0 %v287
        %317 = vmatpush.msra.mxu0 %v286
        %318 = vmatpush.msra.mxu0 %v285
        %319 = vmatpush.msra.mxu0 %v284
        %320 = vmatpush.msra.mxu0 %v283
        %321 = vmatpush.msra.mxu0 %v282
        %322 = vmatpush.msra.mxu0 %v281
        %323 = vmatpush.msra.mxu0 %v280
        %324 = vmatpush.msra.mxu0 %v279
        %325 = vmatpush.msra.mxu0 %v278
        %326 = vmatpush.msra.mxu0 %v277
        %327 = vmatpush.msra.mxu0 %v276
        %328 = vmatmul.f32.gmra.mxu0 %v259
        %v329 = vpop.f32.mrf.mxu0
        %v330 = vadd.f32 %v310, %v329
        %331 = vdwg.mxu0
        // Predicated region
        $region33: #{tpu_custom_call.1} parent=27 // pred_check
          %p332 = pneg %p251
        $region34: #{tpu_custom_call.1} parent=27 // pred_check_branch
          %334 = sbr.rel (%p332) target = $region36
        $region35: #{tpu_custom_call.1} parent=27 // pred_region
          %vm335 = vcmask 64512
          %336 = vst.msk [vmem:[#allocation2] sm:$0xff] %vm335, %v330
        $region36: #{tpu_custom_call.1} parent=27 // pred_fallthru
          _
        %p337 = scmp.gt.s32.totalorder %s25, 0
        // Predicated region
        $region37: #{tpu_custom_call.1} parent=27 // pred_check
          %p338 = pneg %p337
        $region38: #{tpu_custom_call.1} parent=27 // pred_check_branch
          %340 = sbr.rel (%p338) target = $region40
        $region39: #{tpu_custom_call.1} parent=27 // pred_region
          %v341 = vld [vmem:[#allocation2] sm:$0xff]
          %v342 = vadd.f32 %v341, %v330
          %vm343 = vcmask 64512
          %344 = vst.msk [vmem:[#allocation2] sm:$0xff] %vm343, %v342
        $region40: #{tpu_custom_call.1} parent=27 // pred_fallthru
          _
        // Predicated region
        $region41: #{tpu_custom_call.1} parent=27 // pred_check
          %p345 = pneg %p251
        $region42: #{tpu_custom_call.1} parent=27 // pred_check_branch
          %347 = sbr.rel (%p345) target = $region44
        $region43: #{tpu_custom_call.1} parent=27 // pred_region
          %v348 = vld [vmem:[#allocation2] sm:$0xff]
          %vm349 = vcmask 64512
          %v350 = vsel %vm349, %v348, -inf
          %351 = vmax.xlane.f32.xlu0 %v350
          %v352 = vpop.xlane.xlu0 %351
          %v353 = vsub.f32 %v348, %v352
          %v354 = vmul.f32 %v353, 1.442695
          %v355 = vpow.pop %v354
          %v356 = vsel %vm349, %v355, 0.0
          %357 = vadd.xlane.f32.xlu0 %v356
          %v358 = vpop.xlane.xlu0 %357
          %v359 = vrcp.pop %v358
          %v360 = vmul.f32 %v358, %v359
          %v361 = vsub.f32 1.0, %v360
          %v362 = vmul.f32 %v359, %v361
          %v363 = vadd.f32 %v359, %v362
          %vm364 = vweird.f32 %v358
          %vm365 = vweird.f32 %v359
          %vm366 = vmor %vm364, %vm365
          %v367 = vsel %vm366, %v359, %v363
          %v368 = vand.u32 2147483647, %v358
          %vm369 = vcmp.eq.f32.partialorder %v368, 8.507059e+37
          %v370 = vand.u32 %v358, 2147483648
          %v371 = vor.u32 1.1754944e-38, %v370
          %v372 = vsel %vm369, %v371, %v367
          %v373 = vld [vmem:[%s221] sm:$0xff]
          %v374 = vmul.f32 %v355, %v372
          %v375 = vadd.f32 %v373, %v374
          %376 = vst.msk [vmem:[%s221] sm:$0xff] %vm349, %v375
        $region44: #{tpu_custom_call.1} parent=27 // pred_fallthru
          _
        %s377 = sand.u32 %s112, 1
        %s378 = scalar_lea.sflag [#allocation4], %s377
        %s379 = sand.u32 %s112, 1
        %s380 = smul.addr %s379, 8
        %s381 = scalar_lea.vmem [#allocation3], %s380
        // Predicated region
        $region45: #{tpu_custom_call.1} parent=27 // pred_check
          %p382 = pneg %p122
        $region46: #{tpu_custom_call.1} parent=27 // pred_check_branch
          %384 = sbr.rel (%p382) target = $region48
        $region47: #{tpu_custom_call.1} parent=27 // pred_region
          %386 = vsyncadd %s378, 0
          %s387 = smul.addr %s22, 2
          %s388 = sadd.s32 %s23, %s387
          %s389 = smul.addr %s388, 8
          %s390 = scalar_lea.hbm %s2, %s389
          %s392 = sshll.u32 %s381, 4
          %s393 = int_to_ptr.vmem [resolvable:$true] %s392
          %s394 = sshll.u32 %s390, 4
          %s395 = int_to_ptr.hbm [resolvable:$true] %s394
          %397 = dma.vmem_to_hbm [thread:$0]  %s393, 128, %s395, %s378
        $region48: #{tpu_custom_call.1} parent=27 // pred_fallthru
          _
      $region28: #{tpu_custom_call.1} parent=5 // pred_fallthru
        _
      %p398 = scmp.le.s32.totalorder 2, %s11
      // Predicated region
      $region49: #{tpu_custom_call.1} parent=5 // pred_check
        %p399 = pneg %p398
      $region50: #{tpu_custom_call.1} parent=5 // pred_check_branch
        %401 = sbr.rel (%p399) target = $region52
      $region51: #{tpu_custom_call.1} parent=5 // pred_region
        %s402 = ssub.s32 %s11, 2
        // Predicated region
        $region53: #{tpu_custom_call.1} parent=51 // pred_check
          %p403 = pneg %p128
        $region54: #{tpu_custom_call.1} parent=51 // pred_check_branch
          %405 = sbr.rel (%p403) target = $region56
        $region55: #{tpu_custom_call.1} parent=51 // pred_region
          %s406 = sand.u32 %s113, 1
          %s407 = scalar_lea.sflag [#allocation4], %s406
          %s408 = sand.u32 %s113, 1
          %s409 = smul.addr %s408, 8
          %s410 = scalar_lea.vmem [#allocation3], %s409
          %412 = dma.done %s407, 128
        $region56: #{tpu_custom_call.1} parent=51 // pred_fallthru
          _
      $region52: #{tpu_custom_call.1} parent=5 // pred_fallthru
        _
    $region6: #{tpu_custom_call.1} parent=1 // loop_footer
      %s15 = sadd.s32 1, %s11
    $region7: #{tpu_custom_call.1} parent=1 // loop_footer_branch
      %10 = sbr.rel target = $region3
    $region8: #{tpu_custom_call.1} parent=1 // loop_exit
      _
    %413 = vsyncpa [#allocation4], 1
    %s414 = scalar_lea.sflag [#allocation4], 1
    %415 = vsyncpa %s414, 1

</llo_original>
